<compile_context>
chip_gen: v7x
topology: tpu7x:2x2x1
jax: 0.10.0
libtpu: 0.0.40
codegen_flags: <defaults>
</compile_context>

<pallas_src>
import functools

import jax
import jax.numpy as jnp
from jax.experimental import pallas as pl
from jax.experimental.pallas import tpu as pltpu

IN_FEATURES = 119
DEFAULT_TILE_B = 8192       # ~3.7 MiB f32 per x buffer; fits v5e/v6e/v7x scoped-VMEM defaults


def _round_up(n, m):
    return ((n + m - 1) // m) * m


def _sigmoid(x):
    # Exact sigmoid via a single EUP transcendental (tanh) instead of exp + reciprocal.
    return 0.5 * jnp.tanh(0.5 * x) + 0.5


def _income_mlp_kernel(x_ref, w1_ref, b1_ref, w2t_ref, b2_ref, o_ref):
    # x_ref:   (TILE_B, 119) f32   batch tile (pipelined, double-buffered)
    # w1_ref:  (119, H)      f32   VMEM-resident across grid steps
    # b1_ref:  (1, H)        f32
    # w2t_ref: (1, H)        f32   (W2 transposed -> lane-dense second layer)
    # b2_ref:  (1, 1)        f32
    # o_ref:   (1, TILE_B)   f32   lane-dense output slab
    h = jnp.dot(x_ref[...], w1_ref[...], preferred_element_type=jnp.float32)
    h = _sigmoid(h + b1_ref[...])                                  # (TILE_B, H)
    # Contract H of W2^T(1,H) with H of h(TILE_B,H) -> (1, TILE_B): lane-dense result,
    # so the final bias + sigmoid + store run on full 128-lane vregs (unmasked vst).
    y = jax.lax.dot_general(w2t_ref[...], h, (((1,), (1,)), ((), ())),
                            preferred_element_type=jnp.float32)    # (1, TILE_B)
    o_ref[...] = _sigmoid(y + b2_ref[...])


@functools.partial(jax.jit, static_argnames=("tile_b",))
def income_mlp_forward(x, w1, b1, w2, b2, *, tile_b=DEFAULT_TILE_B):
    """x: (B, 119); w1: (119, H); b1: (H,); w2: (H, 1); b2: (1,). Returns (B, 1) f32."""
    B, F = x.shape
    H = w1.shape[1]

    # Tile selection:
    #  * multi-block case: tile_b a multiple of 128 (lane-aligned (1, tile_b) output blocks,
    #    sublane-aligned (tile_b, F) input blocks); ragged tail handled by Pallas.
    #  * single-block case (B <= tile_b): tile_b == B, so every block equals the full
    #    array dims (always a legal block shape, no padding anywhere).
    tile_b = _round_up(max(int(tile_b), 128), 128)
    if tile_b >= B:
        tile_b = B
    grid_n = pl.cdiv(B, tile_b)
    out_cols = grid_n * tile_b

    x_f32 = x.astype(jnp.float32)
    w1_f32 = w1.astype(jnp.float32)
    b1_2d = b1.reshape(1, H).astype(jnp.float32)
    w2t = w2.astype(jnp.float32).reshape(1, H)      # (H,1) -> (1,H)
    b2_2d = b2.reshape(1, 1).astype(jnp.float32)

    cost = pl.CostEstimate(
        flops=2 * B * F * H + 2 * B * H,
        transcendentals=B * (H + 1),                          # one tanh per sigmoid
        bytes_accessed=(B * F * 4                             # x (f32, streamed once)
                        + F * H * 4 + H * 4 + H * 4 + 4       # weights / biases
                        + out_cols * 4),                      # output slab
    )

    out = pl.pallas_call(
        _income_mlp_kernel,
        out_shape=jax.ShapeDtypeStruct((1, out_cols), jnp.float32),
        grid=(grid_n,),
        in_specs=[
            pl.BlockSpec((tile_b, F), lambda i: (i, 0)),      # x tile, pipelined
            pl.BlockSpec((F, H), lambda i: (0, 0)),           # W1: VMEM-resident
            pl.BlockSpec((1, H), lambda i: (0, 0)),           # b1
            pl.BlockSpec((1, H), lambda i: (0, 0)),           # W2^T
            pl.BlockSpec((1, 1), lambda i: (0, 0)),           # b2
        ],
        out_specs=pl.BlockSpec((1, tile_b), lambda i: (0, i)),
        compiler_params=pltpu.CompilerParams(
            dimension_semantics=("parallel",),
        ),
        cost_estimate=cost,
    )(x_f32, w1_f32, b1_2d, w2t, b2_2d)

    # Slice off padded tail columns (unspecified values from ragged tail blocks).
    return out[0, :B].reshape(B, 1)


def reference_forward(x, w1, b1, w2, b2):
    h = jax.nn.sigmoid(x @ w1 + b1[None, :])
    return jax.nn.sigmoid(h @ w2 + b2[None, :])


if __name__ == "__main__":
    key = jax.random.PRNGKey(0)
    kx, kw1, kb1, kw2, kb2, kx2, kx3 = jax.random.split(key, 7)

    in_features = IN_FEATURES   # fixed by the module
    num_neurons = 32            # hidden width (H)

    # Deterministic parameter init mimicking PyTorch Linear default
    # (uniform in +-1/sqrt(fan_in)); stored already-transposed as (in, out).
    bound1 = 1.0 / jnp.sqrt(float(in_features))
    w1 = jax.random.uniform(kw1, (in_features, num_neurons), jnp.float32,
                            minval=-bound1, maxval=bound1)
    b1 = jax.random.uniform(kb1, (num_neurons,), jnp.float32,
                            minval=-bound1, maxval=bound1)

    bound2 = 1.0 / jnp.sqrt(float(num_neurons))
    w2 = jax.random.uniform(kw2, (num_neurons, 1), jnp.float32,
                            minval=-bound2, maxval=bound2)
    b2 = jax.random.uniform(kb2, (1,), jnp.float32,
                            minval=-bound2, maxval=bound2)

    # Case 1: small batch -> single exact block (tile_b == B).
    batch = 8
    x = jax.random.normal(kx, (batch, in_features), jnp.float32)
    out = jax.block_until_ready(income_mlp_forward(x, w1, b1, w2, b2))
    ref = reference_forward(x, w1, b1, w2, b2)
    assert out.shape == (batch, 1)
    assert jnp.allclose(out, ref, atol=1e-4, rtol=1e-4), float(jnp.max(jnp.abs(out - ref)))

    # Case 2: multiple grid steps + ragged tail block (exercises the pipelined path).
    batch2 = 300
    x2 = jax.random.normal(kx2, (batch2, in_features), jnp.float32)
    out2 = jax.block_until_ready(income_mlp_forward(x2, w1, b1, w2, b2, tile_b=128))
    ref2 = reference_forward(x2, w1, b1, w2, b2)
    assert out2.shape == (batch2, 1)
    assert jnp.allclose(out2, ref2, atol=1e-4, rtol=1e-4), float(jnp.max(jnp.abs(out2 - ref2)))

    # Case 3: unaligned batch, single block equal to full array dims (no padding anywhere).
    batch3 = 37
    x3 = jax.random.normal(kx3, (batch3, in_features), jnp.float32)
    out3 = jax.block_until_ready(income_mlp_forward(x3, w1, b1, w2, b2))
    ref3 = reference_forward(x3, w1, b1, w2, b2)
    assert out3.shape == (batch3, 1)
    assert jnp.allclose(out3, ref3, atol=1e-4, rtol=1e-4), float(jnp.max(jnp.abs(out3 - ref3)))

    print("KERNEL_OK")
</pallas_src>

<mosaic_0001>
module attributes {stable_mosaic.version = 11 : i64} {
  func.func @_income_mlp_kernel(%arg0: i32, %arg1: memref<8x119xf32, #tpu.memory_space<vmem>>, %arg2: memref<119x32xf32, #tpu.memory_space<vmem>>, %arg3: memref<1x32xf32, #tpu.memory_space<vmem>>, %arg4: memref<1x32xf32, #tpu.memory_space<vmem>>, %arg5: memref<1x1xf32, #tpu.memory_space<vmem>>, %arg6: memref<1x8xf32, #tpu.memory_space<vmem>>) attributes {dimension_semantics = [#tpu.dimension_semantics<parallel>], iteration_bounds = array<i64: 1>, scalar_prefetch = 0 : i64, scratch_operands = 0 : i64, tpu.core_type = #tpu.core_type<tc>, window_params = [{transform_indices = @transform_0, window_bounds = array<i64: 8, 119>}, {pipeline_mode = #tpu.pipeline_mode<synchronous>, transform_indices = @transform_1, window_bounds = array<i64: 119, 32>}, {pipeline_mode = #tpu.pipeline_mode<synchronous>, transform_indices = @transform_2, window_bounds = array<i64: 1, 32>}, {pipeline_mode = #tpu.pipeline_mode<synchronous>, transform_indices = @transform_3, window_bounds = array<i64: 1, 32>}, {pipeline_mode = #tpu.pipeline_mode<synchronous>, transform_indices = @transform_4, window_bounds = array<i64: 1, 1>}, {transform_indices = @transform_5, window_bounds = array<i64: 1, 8>}]} {
    %c0 = arith.constant 0 : index
    %c0_0 = arith.constant 0 : index
    %0 = vector.load %arg1[%c0, %c0_0] : memref<8x119xf32, #tpu.memory_space<vmem>>, vector<8x119xf32>
    %c0_1 = arith.constant 0 : index
    %c0_2 = arith.constant 0 : index
    %1 = vector.load %arg2[%c0_1, %c0_2] : memref<119x32xf32, #tpu.memory_space<vmem>>, vector<119x32xf32>
    %cst = arith.constant dense<0.000000e+00> : vector<8x32xf32>
    %2 = tpu.matmul %0, %1, %cst {dimension_numbers = #tpu.dot_dimension_numbers<[1], [0], [0], [1], [0, 0, 1, 1], [], []>} : vector<8x119xf32>, vector<119x32xf32>, vector<8x32xf32> -> vector<8x32xf32>
    %c0_3 = arith.constant 0 : index
    %c0_4 = arith.constant 0 : index
    %3 = vector.load %arg3[%c0_3, %c0_4] : memref<1x32xf32, #tpu.memory_space<vmem>>, vector<1x32xf32>
    %4 = vector.broadcast %3 : vector<1x32xf32> to vector<8x32xf32>
    %5 = arith.addf %2, %4 : vector<8x32xf32>
    %cst_5 = arith.constant 5.000000e-01 : f32
    %6 = vector.broadcast %cst_5 : f32 to vector<8x32xf32>
    %7 = arith.mulf %6, %5 : vector<8x32xf32>
    %8 = math.tanh %7 : vector<8x32xf32>
    %cst_6 = arith.constant 5.000000e-01 : f32
    %9 = vector.broadcast %cst_6 : f32 to vector<8x32xf32>
    %10 = arith.mulf %9, %8 : vector<8x32xf32>
    %cst_7 = arith.constant 5.000000e-01 : f32
    %11 = vector.broadcast %cst_7 : f32 to vector<8x32xf32>
    %12 = arith.addf %10, %11 : vector<8x32xf32>
    %c0_8 = arith.constant 0 : index
    %c0_9 = arith.constant 0 : index
    %13 = vector.load %arg4[%c0_8, %c0_9] : memref<1x32xf32, #tpu.memory_space<vmem>>, vector<1x32xf32>
    %cst_10 = arith.constant dense<0.000000e+00> : vector<1x8xf32>
    %14 = tpu.matmul %13, %12, %cst_10 {dimension_numbers = #tpu.dot_dimension_numbers<[1], [1], [0], [0], [0, 0, 1, 0], [], []>} : vector<1x32xf32>, vector<8x32xf32>, vector<1x8xf32> -> vector<1x8xf32>
    %c0_11 = arith.constant 0 : index
    %c0_12 = arith.constant 0 : index
    %15 = vector.load %arg5[%c0_11, %c0_12] : memref<1x1xf32, #tpu.memory_space<vmem>>, vector<1x1xf32>
    %16 = vector.broadcast %15 : vector<1x1xf32> to vector<1x8xf32>
    %17 = arith.addf %14, %16 : vector<1x8xf32>
    %cst_13 = arith.constant 5.000000e-01 : f32
    %18 = vector.broadcast %cst_13 : f32 to vector<1x8xf32>
    %19 = arith.mulf %18, %17 : vector<1x8xf32>
    %20 = math.tanh %19 : vector<1x8xf32>
    %cst_14 = arith.constant 5.000000e-01 : f32
    %21 = vector.broadcast %cst_14 : f32 to vector<1x8xf32>
    %22 = arith.mulf %21, %20 : vector<1x8xf32>
    %cst_15 = arith.constant 5.000000e-01 : f32
    %23 = vector.broadcast %cst_15 : f32 to vector<1x8xf32>
    %24 = arith.addf %22, %23 : vector<1x8xf32>
    %c0_16 = arith.constant 0 : index
    %c0_17 = arith.constant 0 : index
    %25 = vector.load %arg6[%c0_16, %c0_17] : memref<1x8xf32, #tpu.memory_space<vmem>>, vector<1x8xf32>
    tpu.vector_store %arg6[%c0_16, %c0_17], %24 {strides = array<i32>} : memref<1x8xf32, #tpu.memory_space<vmem>>, vector<1x8xf32>,
    return
  }
  func.func @transform_0(%arg0: i32) -> (i32, i32) {
    %c0_i32 = arith.constant 0 : i32
    %c0_i32_0 = arith.constant 0 : i32
    return %arg0, %c0_i32 : i32, i32
  }
  func.func @transform_1(%arg0: i32) -> (i32, i32) {
    %c0_i32 = arith.constant 0 : i32
    %c0_i32_0 = arith.constant 0 : i32
    %c0_i32_1 = arith.constant 0 : i32
    return %c0_i32, %c0_i32_0 : i32, i32
  }
  func.func @transform_2(%arg0: i32) -> (i32, i32) {
    %c0_i32 = arith.constant 0 : i32
    %c0_i32_0 = arith.constant 0 : i32
    %c0_i32_1 = arith.constant 0 : i32
    return %c0_i32, %c0_i32_0 : i32, i32
  }
  func.func @transform_3(%arg0: i32) -> (i32, i32) {
    %c0_i32 = arith.constant 0 : i32
    %c0_i32_0 = arith.constant 0 : i32
    %c0_i32_1 = arith.constant 0 : i32
    return %c0_i32, %c0_i32_0 : i32, i32
  }
  func.func @transform_4(%arg0: i32) -> (i32, i32) {
    %c0_i32 = arith.constant 0 : i32
    %c0_i32_0 = arith.constant 0 : i32
    %c0_i32_1 = arith.constant 0 : i32
    return %c0_i32, %c0_i32_0 : i32, i32
  }
  func.func @transform_5(%arg0: i32) -> (i32, i32) {
    %c0_i32 = arith.constant 0 : i32
    %c0_i32_0 = arith.constant 0 : i32
    return %c0_i32, %arg0 : i32, i32
  }
}

</mosaic_0001>

<llo_original>
// kernel: income_mlp_forward.1
$region0: #{income_mlp_forward.1}
  #allocation0 [shape = 'u32[]', space=smem, size = 0x4, offset = 0x4, fixed_abs, tag = 'smem constant byte address 0x4 - core index']
  #allocation1 [shape = 'u32[144,128]{1,0:T(1,128)}', space=vmem, size = 0x12000, scoped, tag = 'internal scratch']
  #allocation2 [shape = 'f32[1,1]{1,0:T(1,128)S(1)}', space=vmem, size = 0x200, scoped, tag = 'scoped memory for income_mlp_forward.1']
  %s0 = inlined_call_operand.vmem [shape: f32[8,119], index: 0, kind: input, shape index: {}]
  %s1 = inlined_call_operand.vmem [shape: f32[119,32], index: 1, kind: input, shape index: {}]
  %s2 = inlined_call_operand.vmem [shape: f32[1,32], index: 2, kind: input, shape index: {}]
  %s3 = inlined_call_operand.vmem [shape: f32[1,32], index: 3, kind: input, shape index: {}]
  %s4 = inlined_call_operand.<no memory space> [shape: f32[1,1], index: 4, kind: input, shape index: {}]
  %s5 = inlined_call_operand.hbm [shape: f32[1,8], index: 5, kind: output, shape index: {}]
  %s6 = sld [smem:[#allocation0]]
  $region30: #{income_mlp_forward.1} parent=0
    _
  %s8 = ssub.s32 1, %s6
  %s9 = scalar_select 0, %s8, %s6
  %v10 = vstv %s4
  %11 = vst [vmem:[#allocation2] sm:$0x1] %v10
  $region1: #{income_mlp_forward.1} parent=0
    #allocation3 [shape = 'u8[512]{0}', space=vmem, size = 0x400, scoped, tag = 'output window, operand 0, single buffered']
    #allocation4 [shape = 's32[1]{0}', space=sflag, size = 0x4, scoped, tag = 'scoped memory for income_mlp_forward.1']
    %12 = vsyncpa [#allocation4], 0
    // Predicated region
    $region2: #{income_mlp_forward.1} parent=1 // pred_check
      _
    $region3: #{income_mlp_forward.1} parent=1 // pred_check_branch
      %14 = sbr.rel (0) target = $region5
    $region4: #{income_mlp_forward.1} parent=1 // pred_region
      _
    $region5: #{income_mlp_forward.1} parent=1 // pred_fallthru
      _
    // Predicated region
    $region6: #{income_mlp_forward.1} parent=1 // pred_check
      _
    $region7: #{income_mlp_forward.1} parent=1 // pred_check_branch
      %16 = sbr.rel (0) target = $region9
    $region8: #{income_mlp_forward.1} parent=1 // pred_region
      _
    $region9: #{income_mlp_forward.1} parent=1 // pred_fallthru
      _
    // Predicated region
    $region10: #{income_mlp_forward.1} parent=1 // pred_check
      _
    $region11: #{income_mlp_forward.1} parent=1 // pred_check_branch
      %18 = sbr.rel (0) target = $region13
    $region12: #{income_mlp_forward.1} parent=1 // pred_region
      _
    $region13: #{income_mlp_forward.1} parent=1 // pred_fallthru
      _
    // Predicated region
    $region14: #{income_mlp_forward.1} parent=1 // pred_check
      _
    $region15: #{income_mlp_forward.1} parent=1 // pred_check_branch
      %20 = sbr.rel (0) target = $region17
    $region16: #{income_mlp_forward.1} parent=1 // pred_region
      _
    $region17: #{income_mlp_forward.1} parent=1 // pred_fallthru
      _
    // Predicated region
    $region18: #{income_mlp_forward.1} parent=1 // pred_check
      _
    $region19: #{income_mlp_forward.1} parent=1 // pred_check_branch
      %22 = sbr.rel (0) target = $region21
    $region20: #{income_mlp_forward.1} parent=1 // pred_region
      _
    $region21: #{income_mlp_forward.1} parent=1 // pred_fallthru
      _
    %v23 = vld [vmem:[%s0] sm:$0xff]
    %v24 = vld [vmem:[%s1] sm:$0xff]
    %v25 = vld [vmem:[%s1 + $0x8] sm:$0xff]
    %v26 = vld [vmem:[%s1 + $0x10] sm:$0xff]
    %v27 = vld [vmem:[%s1 + $0x18] sm:$0xff]
    %v28 = vld [vmem:[%s1 + $0x20] sm:$0xff]
    %v29 = vld [vmem:[%s1 + $0x28] sm:$0xff]
    %v30 = vld [vmem:[%s1 + $0x30] sm:$0xff]
    %v31 = vld [vmem:[%s1 + $0x38] sm:$0xff]
    %v32 = vld [vmem:[%s1 + $0x40] sm:$0xff]
    %v33 = vld [vmem:[%s1 + $0x48] sm:$0xff]
    %v34 = vld [vmem:[%s1 + $0x50] sm:$0xff]
    %v35 = vld [vmem:[%s1 + $0x58] sm:$0xff]
    %v36 = vld [vmem:[%s1 + $0x60] sm:$0xff]
    %v37 = vld [vmem:[%s1 + $0x68] sm:$0xff]
    %v38 = vld [vmem:[%s1 + $0x70] sm:$0x7f]
    %v39 = vld [vmem:[%s2] sm:$0x1]
    %v41 = vlaneseq
    %v42 = vshrl.u32 %v41, 7
    %v43 = vsub.s32 0, %v42
    %v44 = vrot.slane %v39, %v43
    %vm46 = vcmask 973824
    %v48 = vsel %vm46, %v23, 0
    %vm50 = vcmask 1046528
    %v52 = vsel %vm50, %v38, 0
    %54 = vmatprep.subr.mxu0 0.0
    %55 = vmatpush1.msra.mxu0 %v24
    %56 = vmatprep.subr.mxu0 0.0
    %57 = vmatpush1.msra.mxu0 %v25
    %58 = vmatprep.subr.mxu0 0.0
    %59 = vmatpush1.msra.mxu0 %v26
    %60 = vmatprep.subr.mxu0 0.0
    %61 = vmatpush1.msra.mxu0 %v27
    %62 = vmatprep.subr.mxu0 0.0
    %63 = vmatpush1.msra.mxu0 %v28
    %64 = vmatprep.subr.mxu0 0.0
    %65 = vmatpush1.msra.mxu0 %v29
    %66 = vmatprep.subr.mxu0 0.0
    %67 = vmatpush1.msra.mxu0 %v30
    %68 = vmatprep.subr.mxu0 0.0
    %69 = vmatpush1.msra.mxu0 %v31
    %70 = vmatprep.subr.mxu0 0.0
    %71 = vmatpush1.msra.mxu0 %v32
    %72 = vmatprep.subr.mxu0 0.0
    %73 = vmatpush1.msra.mxu0 %v33
    %74 = vmatprep.subr.mxu0 0.0
    %75 = vmatpush1.msra.mxu0 %v34
    %76 = vmatprep.subr.mxu0 0.0
    %77 = vmatpush1.msra.mxu0 %v35
    %78 = vmatprep.subr.mxu0 0.0
    %79 = vmatpush1.msra.mxu0 %v36
    %80 = vmatprep.subr.mxu0 0.0
    %81 = vmatpush1.msra.mxu0 %v37
    %82 = vmatprep.subr.mxu0 0.0
    %83 = vmatpush1.msra.mxu0 %v52
    %84 = vmatprep.subr.mxu0 0.0
    %85 = vmatpush1.msra.mxu0 0.0
    %86 = vmatprep.subr.mxu0 0.0
    %87 = vmatpush1.msra.mxu0 0.0
    %88 = vmatprep.subr.mxu0 0.0
    %89 = vmatpush1.msra.mxu0 0.0
    %90 = vmatprep.subr.mxu0 0.0
    %91 = vmatpush1.msra.mxu0 0.0
    %92 = vmatprep.subr.mxu0 0.0
    %93 = vmatpush1.msra.mxu0 0.0
    %94 = vmatprep.subr.mxu0 0.0
    %95 = vmatpush1.msra.mxu0 0.0
    %96 = vmatprep.subr.mxu0 0.0
    %97 = vmatpush1.msra.mxu0 0.0
    %98 = vmatprep.subr.mxu0 0.0
    %99 = vmatpush1.msra.mxu0 0.0
    %100 = vmatprep.subr.mxu0 0.0
    %101 = vmatpush1.msra.mxu0 0.0
    %102 = vmatprep.subr.mxu0 0.0
    %103 = vmatpush1.msra.mxu0 0.0
    %104 = vmatprep.subr.mxu0 0.0
    %105 = vmatpush1.msra.mxu0 0.0
    %106 = vmatprep.subr.mxu0 0.0
    %107 = vmatpush1.msra.mxu0 0.0
    %108 = vmatprep.subr.mxu0 0.0
    %109 = vmatpush1.msra.mxu0 0.0
    %110 = vmatprep.subr.mxu0 0.0
    %111 = vmatpush1.msra.mxu0 0.0
    %112 = vmatprep.subr.mxu0 0.0
    %113 = vmatpush1.msra.mxu0 0.0
    %114 = vmatprep.subr.mxu0 0.0
    %115 = vmatpush1.msra.mxu0 0.0
    %116 = vmatprep.subr.mxu0 0.0
    %117 = vmatpush1.msra.mxu0 0.0
    %118 = vmatprep.mubr.f32.mxu0 0.0
    %119 = vmatmul.mubr.f32.gmra.mrb[0].mxu0 %v48
    %v120 = vpop.f32.mrb[0].mxu0
    %v121 = vadd.f32 %v44, %v120
    %v122 = vpop.f32.mrb[0].mxu0
    %123 = vdwg.mxu0
    %v124 = vmul.f32 %v121, 0.5
    %v125 = vtanh.pop %v124
    %v126 = vmul.f32 %v125, 0.5
    %v127 = vadd.f32 %v126, 0.5
    %v128 = vld [vmem:[%s3] sm:$0x1]
    %v129 = vld [vmem:[#allocation2] sm:$0x1]
    %131 = vset.pattern.permute.xlu0 0
    %132 = vperm.xlu0 %131, %v129
    %v133 = vpop.permute.xlu0 %132
    %v135 = vlaneseq
    %v136 = vshrl.u32 %v135, 7
    %v137 = vsub.s32 0, %v136
    %v138 = vrot.slane %v133, %v137
    %vm139 = vcmask 261120
    %v141 = vsel %vm139, %v128, 0
    %v144 = vsel %vm139, %v127, 0
    %146 = vmatprep.subr.mxu0 0.0
    %147 = vmatpush1.xpose.msra.mxu0 %v144
    %148 = vmatprep.subr.mxu0 0.0
    %149 = vmatpush1.xpose.msra.mxu0 0.0
    %150 = vmatprep.subr.mxu0 0.0
    %151 = vmatpush1.xpose.msra.mxu0 0.0
    %152 = vmatprep.subr.mxu0 0.0
    %153 = vmatpush1.xpose.msra.mxu0 0.0
    %154 = vmatprep.subr.mxu0 0.0
    %155 = vmatpush1.xpose.msra.mxu0 0.0
    %156 = vmatprep.subr.mxu0 0.0
    %157 = vmatpush1.xpose.msra.mxu0 0.0
    %158 = vmatprep.subr.mxu0 0.0
    %159 = vmatpush1.xpose.msra.mxu0 0.0
    %160 = vmatprep.subr.mxu0 0.0
    %161 = vmatpush1.xpose.msra.mxu0 0.0
    %162 = vmatprep.subr.mxu0 0.0
    %163 = vmatpush1.xpose.msra.mxu0 0.0
    %164 = vmatprep.subr.mxu0 0.0
    %165 = vmatpush1.xpose.msra.mxu0 0.0
    %166 = vmatprep.subr.mxu0 0.0
    %167 = vmatpush1.xpose.msra.mxu0 0.0
    %168 = vmatprep.subr.mxu0 0.0
    %169 = vmatpush1.xpose.msra.mxu0 0.0
    %170 = vmatprep.subr.mxu0 0.0
    %171 = vmatpush1.xpose.msra.mxu0 0.0
    %172 = vmatprep.subr.mxu0 0.0
    %173 = vmatpush1.xpose.msra.mxu0 0.0
    %174 = vmatprep.subr.mxu0 0.0
    %175 = vmatpush1.xpose.msra.mxu0 0.0
    %176 = vmatprep.subr.mxu0 0.0
    %177 = vmatpush1.xpose.msra.mxu0 0.0
    %178 = vmatprep.subr.mxu0 0.0
    %179 = vmatpush1.xpose.msra.mxu0 0.0
    %180 = vmatprep.subr.mxu0 0.0
    %181 = vmatpush1.xpose.msra.mxu0 0.0
    %182 = vmatprep.subr.mxu0 0.0
    %183 = vmatpush1.xpose.msra.mxu0 0.0
    %184 = vmatprep.subr.mxu0 0.0
    %185 = vmatpush1.xpose.msra.mxu0 0.0
    %186 = vmatprep.subr.mxu0 0.0
    %187 = vmatpush1.xpose.msra.mxu0 0.0
    %188 = vmatprep.subr.mxu0 0.0
    %189 = vmatpush1.xpose.msra.mxu0 0.0
    %190 = vmatprep.subr.mxu0 0.0
    %191 = vmatpush1.xpose.msra.mxu0 0.0
    %192 = vmatprep.subr.mxu0 0.0
    %193 = vmatpush1.xpose.msra.mxu0 0.0
    %194 = vmatprep.subr.mxu0 0.0
    %195 = vmatpush1.xpose.msra.mxu0 0.0
    %196 = vmatprep.subr.mxu0 0.0
    %197 = vmatpush1.xpose.msra.mxu0 0.0
    %198 = vmatprep.subr.mxu0 0.0
    %199 = vmatpush1.xpose.msra.mxu0 0.0
    %200 = vmatprep.subr.mxu0 0.0
    %201 = vmatpush1.xpose.msra.mxu0 0.0
    %202 = vmatprep.subr.mxu0 0.0
    %203 = vmatpush1.xpose.msra.mxu0 0.0
    %204 = vmatprep.subr.mxu0 0.0
    %205 = vmatpush1.xpose.msra.mxu0 0.0
    %206 = vmatprep.subr.mxu0 0.0
    %207 = vmatpush1.xpose.msra.mxu0 0.0
    %208 = vmatprep.subr.mxu0 0.0
    %209 = vmatpush1.xpose.msra.mxu0 0.0
    %210 = vmatprep.mubr.f32.mxu0 0.0
    %211 = vmatmul.mubr.f32.gmra.mrb[0].mxu0 %v141
    %v212 = vpop.f32.mrb[0].mxu0
    %v213 = vadd.f32 %v138, %v212
    %v214 = vpop.f32.mrb[0].mxu0
    %215 = vdwg.mxu0
    %v216 = vmul.f32 %v213, 0.5
    %v217 = vtanh.pop %v216
    %v218 = vmul.f32 %v217, 0.5
    %v219 = vadd.f32 %v218, 0.5
    %vm220 = vcmask 57344
    %221 = vst.msk [vmem:[#allocation3] sm:$0x1] %vm220, %v219
    // Predicated region
    $region22: #{income_mlp_forward.1} parent=1 // pred_check
      _
    $region23: #{income_mlp_forward.1} parent=1 // pred_check_branch
      %223 = sbr.rel (0) target = $region25
    $region24: #{income_mlp_forward.1} parent=1 // pred_region
      %s225 = ssub.s32 16, 16
      %226 = vsyncadd [#allocation4], %s225
      %s228 = sshll.u32 [#allocation3], 4
      %s229 = int_to_ptr.vmem [resolvable:$true] %s228
      %231 = dma.vmem_to_hbm [thread:$0]  %s229, 16, %s5, [#allocation4]
    $region25: #{income_mlp_forward.1} parent=1 // pred_fallthru
      _
    // Predicated region
    $region26: #{income_mlp_forward.1} parent=1 // pred_check
      _
    $region27: #{income_mlp_forward.1} parent=1 // pred_check_branch
      %233 = sbr.rel (0) target = $region29
    $region28: #{income_mlp_forward.1} parent=1 // pred_region
      %234 = dma.done [#allocation4], 16
    $region29: #{income_mlp_forward.1} parent=1 // pred_fallthru
      _
    %235 = vsyncpa [#allocation4], 1

</llo_original>
